<compile_context>
chip_gen: v7x
topology: tpu7x:2x2x1
jax: 0.10.0
libtpu: 0.0.40
codegen_flags: <defaults>
</compile_context>

<pallas_src>
import functools

import jax
import jax.numpy as jnp
from jax.experimental import pallas as pl
from jax.experimental.pallas import tpu as pltpu

EPS = 1e-8  # nn.CosineSimilarity default eps


def _cosine_rows_kernel(x1_ref, x2_ref, cos_ref, dot_acc, n1_acc, n2_acc, *,
                        feat_dim, feat_tile, mask_last_feat):
    j = pl.program_id(1)
    nj = pl.num_programs(1)

    @pl.when(j == 0)
    def _():
        dot_acc[...] = jnp.zeros_like(dot_acc)
        n1_acc[...] = jnp.zeros_like(n1_acc)
        n2_acc[...] = jnp.zeros_like(n2_acc)

    x1 = x1_ref[...].astype(jnp.float32)
    x2 = x2_ref[...].astype(jnp.float32)

    def accumulate(a, b):
        dot_acc[...] += jnp.sum(a * b, axis=1, keepdims=True)
        n1_acc[...] += jnp.sum(a * a, axis=1, keepdims=True)
        n2_acc[...] += jnp.sum(b * b, axis=1, keepdims=True)

    if mask_last_feat:
        # Steady-state feature tiles run unmasked; only the ragged last feature tile
        # pays for the iota/compare/select.
        @pl.when(j < nj - 1)
        def _():
            accumulate(x1, x2)

        @pl.when(j == nj - 1)
        def _():
            col = j * feat_tile + jax.lax.broadcasted_iota(jnp.int32, x1.shape, 1)
            valid = col < feat_dim
            accumulate(jnp.where(valid, x1, 0.0), jnp.where(valid, x2, 0.0))
    else:
        accumulate(x1, x2)

    @pl.when(j == nj - 1)
    def _():
        # max(sqrt(p), eps) == sqrt(max(p, eps^2)) for p >= 0  ->  one rsqrt + one mul.
        denom_sq = jnp.maximum(n1_acc[...] * n2_acc[...], EPS * EPS)
        cos_ref[...] = dot_acc[...] * jax.lax.rsqrt(denom_sq)


def _sublane_multiple(dtype):
    itemsize = jnp.dtype(dtype).itemsize
    return max(8, 32 // max(itemsize, 1))  # 8 for f32, 16 for bf16, 32 for int8/fp8


def _vmem_params():
    try:
        cap = int(pltpu.get_tpu_info().vmem_capacity_bytes)
    except Exception:
        cap = 64 * 1024 * 1024  # conservative fallback (v7x per-core VMEM)
    vmem_limit = min(cap // 2, 96 * 1024 * 1024)   # 32 MiB on v7x, 64 MiB on v5e/v6e
    budget = (vmem_limit * 3) // 4                 # double-buffered working-set target
    return budget, vmem_limit


def _round_down(x, m):
    return (x // m) * m


def _pick_tiles(batch, feat, itemsize, sub, budget, row_tile, feat_tile):
    per_elem = 4 * itemsize  # 2 inputs x 2 pipeline buffers
    b_cap = max(sub, _round_down(batch, sub))  # largest row tile not exceeding the array

    # feature tile: full D unless even `sub` rows of full D would blow the budget
    if feat_tile is not None:
        td = max(128, _round_down(feat_tile, 128))
    elif budget >= per_elem * sub * feat:
        td = feat
    else:
        td = max(128, _round_down(budget // (per_elem * 512), 128))
    td = min(td, feat)  # result is either == feat (full dim) or a 128-multiple < feat

    # row tile: fill the budget, rounded to the dtype sublane multiple
    if row_tile is not None:
        tb = min(max(sub, _round_down(row_tile, sub)), b_cap)
    else:
        tb = _round_down(budget // (per_elem * td), sub)
        tb = max(sub, min(tb, 8192, b_cap))
    return tb, td


def cosine_similarity_loss(input1, input2, *, row_tile=None, feat_tile=None):
    """Pallas TPU equivalent of CosineSimilarityLoss.forward for 2-D (batch, features)."""
    # TODO(synk): inputs with ndim > 2 (cosine over dim=1 of N-D tensors) are not
    # handled; reshape/transpose to (rows, features) in the caller if needed.
    assert input1.shape == input2.shape and input1.ndim == 2
    assert input1.dtype == input2.dtype
    B, D = input1.shape

    itemsize = jnp.dtype(input1.dtype).itemsize
    sub = _sublane_multiple(input1.dtype)
    budget, vmem_limit = _vmem_params()

    # Tiny batches (< one sublane tile) get a minimal pad so no block ever exceeds the
    # array shape; this copies at most `sub - 1` extra rows (the array is tiny anyway).
    b_work = B
    if B < sub:
        pad = sub - B
        input1 = jnp.pad(input1, ((0, pad), (0, 0)))
        input2 = jnp.pad(input2, ((0, pad), (0, 0)))
        b_work = sub

    tb, td = _pick_tiles(b_work, D, itemsize, sub, budget, row_tile, feat_tile)
    num_row_tiles = pl.cdiv(b_work, tb)
    num_feat_tiles = pl.cdiv(D, td)
    mask_last_feat = (td < D) and (D % td != 0)

    kernel = functools.partial(
        _cosine_rows_kernel,
        feat_dim=D, feat_tile=td, mask_last_feat=mask_last_feat)

    cos = pl.pallas_call(
        kernel,
        out_shape=jax.ShapeDtypeStruct((b_work, 1), jnp.float32),
        grid=(num_row_tiles, num_feat_tiles),
        in_specs=[
            pl.BlockSpec((tb, td), lambda i, j: (i, j)),
            pl.BlockSpec((tb, td), lambda i, j: (i, j)),
        ],
        out_specs=pl.BlockSpec((tb, 1), lambda i, j: (i, 0)),
        scratch_shapes=[
            pltpu.VMEM((tb, 1), jnp.float32),
            pltpu.VMEM((tb, 1), jnp.float32),
            pltpu.VMEM((tb, 1), jnp.float32),
        ],
        compiler_params=pltpu.CompilerParams(
            # Row tiles are independent -> megacore-shardable on v7x; the feature
            # axis carries the running reductions -> sequential.
            dimension_semantics=("parallel", "arbitrary"),
            vmem_limit_bytes=vmem_limit,
        ),
    )(input1, input2)

    # Epilogue: loss = 1 - mean(cos) over the true batch.
    return 1.0 - jnp.mean(cos[:B, 0])


def _reference_loss(x1, x2):
    x1 = x1.astype(jnp.float32)
    x2 = x2.astype(jnp.float32)
    dot = jnp.sum(x1 * x2, axis=1)
    n1sq = jnp.sum(x1 * x1, axis=1)
    n2sq = jnp.sum(x2 * x2, axis=1)
    return 1.0 - jnp.mean(dot / jnp.maximum(jnp.sqrt(n1sq * n2sq), EPS))


if __name__ == "__main__":
    key = jax.random.PRNGKey(0)
    k1, k2, k3, k4, k5, k6 = jax.random.split(key, 6)

    # case 1: aligned small batch, auto tiles (single row/feature tile path)
    x1 = jax.random.normal(k1, (32, 256), dtype=jnp.float32)
    x2 = jax.random.normal(k2, (32, 256), dtype=jnp.float32)
    loss = jax.block_until_ready(cosine_similarity_loss(x1, x2))
    ref = _reference_loss(x1, x2)
    assert jnp.allclose(loss, ref, atol=1e-5, rtol=1e-5), (loss, ref)

    # case 2: ragged batch (20 % 8 != 0) + ragged feature tiling (192 % 128 != 0):
    # exercises partial last row block, multi-step accumulation, last-feature-tile mask.
    y1 = jax.random.normal(k3, (20, 192), dtype=jnp.float32)
    y2 = jax.random.normal(k4, (20, 192), dtype=jnp.float32)
    loss2 = jax.block_until_ready(
        cosine_similarity_loss(y1, y2, row_tile=8, feat_tile=128))
    ref2 = _reference_loss(y1, y2)
    assert jnp.allclose(loss2, ref2, atol=1e-5, rtol=1e-5), (loss2, ref2)

    # case 3: bf16 inputs (exercises 16-row sublane rounding; compute stays in f32)
    z1 = jax.random.normal(k5, (16, 128), dtype=jnp.bfloat16)
    z2 = jax.random.normal(k6, (16, 128), dtype=jnp.bfloat16)
    loss3 = jax.block_until_ready(cosine_similarity_loss(z1, z2))
    ref3 = _reference_loss(z1, z2)
    assert jnp.allclose(loss3, ref3, atol=1e-4, rtol=1e-4), (loss3, ref3)

    print("KERNEL_OK")
</pallas_src>

<mosaic_0001>
module attributes {stable_mosaic.version = 11 : i64} {
  func.func @_cosine_rows_kernel(%arg0: i32, %arg1: i32, %arg2: memref<32x256xf32, #tpu.memory_space<vmem>>, %arg3: memref<32x256xf32, #tpu.memory_space<vmem>>, %arg4: memref<32x1xf32, #tpu.memory_space<vmem>>, %arg5: memref<32x1xf32, #tpu.memory_space<vmem>>, %arg6: memref<32x1xf32, #tpu.memory_space<vmem>>, %arg7: memref<32x1xf32, #tpu.memory_space<vmem>>) attributes {dimension_semantics = [#tpu.dimension_semantics<parallel>, #tpu.dimension_semantics<arbitrary>], iteration_bounds = array<i64: 1, 1>, scalar_prefetch = 0 : i64, scratch_operands = 3 : i64, tpu.core_type = #tpu.core_type<tc>, window_params = [{transform_indices = @transform_0, window_bounds = array<i64: 32, 256>}, {transform_indices = @transform_1, window_bounds = array<i64: 32, 256>}, {transform_indices = @transform_2, window_bounds = array<i64: 32, 1>}]} {
    %c0_i32 = arith.constant 0 : i32
    %0 = arith.cmpi eq, %arg1, %c0_i32 : i32
    %1 = arith.extui %0 : i1 to i32
    %c0_i32_0 = arith.constant 0 : i32
    %2 = arith.cmpi ne, %1, %c0_i32_0 : i32
    scf.if %2 {
      %cst_20 = arith.constant 0.000000e+00 : f32
      %26 = vector.broadcast %cst_20 : f32 to vector<32x1xf32>
      %c0_21 = arith.constant 0 : index
      %c0_22 = arith.constant 0 : index
      %27 = vector.load %arg5[%c0_21, %c0_22] : memref<32x1xf32, #tpu.memory_space<vmem>>, vector<32x1xf32>
      tpu.vector_store %arg5[%c0_21, %c0_22], %26 {strides = array<i32>} : memref<32x1xf32, #tpu.memory_space<vmem>>, vector<32x1xf32>,
      %cst_23 = arith.constant 0.000000e+00 : f32
      %28 = vector.broadcast %cst_23 : f32 to vector<32x1xf32>
      %c0_24 = arith.constant 0 : index
      %c0_25 = arith.constant 0 : index
      %29 = vector.load %arg6[%c0_24, %c0_25] : memref<32x1xf32, #tpu.memory_space<vmem>>, vector<32x1xf32>
      tpu.vector_store %arg6[%c0_24, %c0_25], %28 {strides = array<i32>} : memref<32x1xf32, #tpu.memory_space<vmem>>, vector<32x1xf32>,
      %cst_26 = arith.constant 0.000000e+00 : f32
      %30 = vector.broadcast %cst_26 : f32 to vector<32x1xf32>
      %c0_27 = arith.constant 0 : index
      %c0_28 = arith.constant 0 : index
      %31 = vector.load %arg7[%c0_27, %c0_28] : memref<32x1xf32, #tpu.memory_space<vmem>>, vector<32x1xf32>
      tpu.vector_store %arg7[%c0_27, %c0_28], %30 {strides = array<i32>} : memref<32x1xf32, #tpu.memory_space<vmem>>, vector<32x1xf32>,
    } else {
    }
    %c0 = arith.constant 0 : index
    %c0_1 = arith.constant 0 : index
    %3 = vector.load %arg2[%c0, %c0_1] : memref<32x256xf32, #tpu.memory_space<vmem>>, vector<32x256xf32>
    %c0_2 = arith.constant 0 : index
    %c0_3 = arith.constant 0 : index
    %4 = vector.load %arg3[%c0_2, %c0_3] : memref<32x256xf32, #tpu.memory_space<vmem>>, vector<32x256xf32>
    %c0_4 = arith.constant 0 : index
    %c0_5 = arith.constant 0 : index
    %5 = vector.load %arg5[%c0_4, %c0_5] : memref<32x1xf32, #tpu.memory_space<vmem>>, vector<32x1xf32>
    %6 = arith.mulf %3, %4 : vector<32x256xf32>
    %cst = arith.constant dense<0.000000e+00> : vector<32xf32>
    %7 = vector.multi_reduction <add>, %6, %cst [1] : vector<32x256xf32> to vector<32xf32>
    %8 = vector.shape_cast %7 : vector<32xf32> to vector<32x1xf32>
    %9 = arith.addf %5, %8 : vector<32x1xf32>
    %c0_6 = arith.constant 0 : index
    %c0_7 = arith.constant 0 : index
    %10 = vector.load %arg5[%c0_6, %c0_7] : memref<32x1xf32, #tpu.memory_space<vmem>>, vector<32x1xf32>
    tpu.vector_store %arg5[%c0_6, %c0_7], %9 {strides = array<i32>} : memref<32x1xf32, #tpu.memory_space<vmem>>, vector<32x1xf32>,
    %c0_8 = arith.constant 0 : index
    %c0_9 = arith.constant 0 : index
    %11 = vector.load %arg6[%c0_8, %c0_9] : memref<32x1xf32, #tpu.memory_space<vmem>>, vector<32x1xf32>
    %12 = arith.mulf %3, %3 : vector<32x256xf32>
    %cst_10 = arith.constant dense<0.000000e+00> : vector<32xf32>
    %13 = vector.multi_reduction <add>, %12, %cst_10 [1] : vector<32x256xf32> to vector<32xf32>
    %14 = vector.shape_cast %13 : vector<32xf32> to vector<32x1xf32>
    %15 = arith.addf %11, %14 : vector<32x1xf32>
    %c0_11 = arith.constant 0 : index
    %c0_12 = arith.constant 0 : index
    %16 = vector.load %arg6[%c0_11, %c0_12] : memref<32x1xf32, #tpu.memory_space<vmem>>, vector<32x1xf32>
    tpu.vector_store %arg6[%c0_11, %c0_12], %15 {strides = array<i32>} : memref<32x1xf32, #tpu.memory_space<vmem>>, vector<32x1xf32>,
    %c0_13 = arith.constant 0 : index
    %c0_14 = arith.constant 0 : index
    %17 = vector.load %arg7[%c0_13, %c0_14] : memref<32x1xf32, #tpu.memory_space<vmem>>, vector<32x1xf32>
    %18 = arith.mulf %4, %4 : vector<32x256xf32>
    %cst_15 = arith.constant dense<0.000000e+00> : vector<32xf32>
    %19 = vector.multi_reduction <add>, %18, %cst_15 [1] : vector<32x256xf32> to vector<32xf32>
    %20 = vector.shape_cast %19 : vector<32xf32> to vector<32x1xf32>
    %21 = arith.addf %17, %20 : vector<32x1xf32>
    %c0_16 = arith.constant 0 : index
    %c0_17 = arith.constant 0 : index
    %22 = vector.load %arg7[%c0_16, %c0_17] : memref<32x1xf32, #tpu.memory_space<vmem>>, vector<32x1xf32>
    tpu.vector_store %arg7[%c0_16, %c0_17], %21 {strides = array<i32>} : memref<32x1xf32, #tpu.memory_space<vmem>>, vector<32x1xf32>,
    %c0_i32_18 = arith.constant 0 : i32
    %23 = arith.cmpi eq, %arg1, %c0_i32_18 : i32
    %24 = arith.extui %23 : i1 to i32
    %c0_i32_19 = arith.constant 0 : i32
    %25 = arith.cmpi ne, %24, %c0_i32_19 : i32
    scf.if %25 {
      %c0_20 = arith.constant 0 : index
      %c0_21 = arith.constant 0 : index
      %26 = vector.load %arg6[%c0_20, %c0_21] : memref<32x1xf32, #tpu.memory_space<vmem>>, vector<32x1xf32>
      %c0_22 = arith.constant 0 : index
      %c0_23 = arith.constant 0 : index
      %27 = vector.load %arg7[%c0_22, %c0_23] : memref<32x1xf32, #tpu.memory_space<vmem>>, vector<32x1xf32>
      %28 = arith.mulf %26, %27 : vector<32x1xf32>
      %cst_24 = arith.constant 1.000000e-16 : f32
      %29 = vector.broadcast %cst_24 : f32 to vector<32x1xf32>
      %30 = arith.maximumf %28, %29 : vector<32x1xf32>
      %c0_25 = arith.constant 0 : index
      %c0_26 = arith.constant 0 : index
      %31 = vector.load %arg5[%c0_25, %c0_26] : memref<32x1xf32, #tpu.memory_space<vmem>>, vector<32x1xf32>
      %32 = math.rsqrt %30 : vector<32x1xf32>
      %33 = arith.mulf %31, %32 : vector<32x1xf32>
      %c0_27 = arith.constant 0 : index
      %c0_28 = arith.constant 0 : index
      %34 = vector.load %arg4[%c0_27, %c0_28] : memref<32x1xf32, #tpu.memory_space<vmem>>, vector<32x1xf32>
      tpu.vector_store %arg4[%c0_27, %c0_28], %33 {strides = array<i32>} : memref<32x1xf32, #tpu.memory_space<vmem>>, vector<32x1xf32>,
    } else {
    }
    return
  }
  func.func @transform_0(%arg0: i32, %arg1: i32) -> (i32, i32) {
    %c0_i32 = arith.constant 0 : i32
    return %arg0, %arg1 : i32, i32
  }
  func.func @transform_1(%arg0: i32, %arg1: i32) -> (i32, i32) {
    %c0_i32 = arith.constant 0 : i32
    return %arg0, %arg1 : i32, i32
  }
  func.func @transform_2(%arg0: i32, %arg1: i32) -> (i32, i32) {
    %c0_i32 = arith.constant 0 : i32
    %c0_i32_0 = arith.constant 0 : i32
    return %arg0, %c0_i32 : i32, i32
  }
}

</mosaic_0001>

<llo_original>
// kernel: tpu_custom_call.1
$region0: #{tpu_custom_call.1}
  #allocation0 [shape = 'u32[]', space=smem, size = 0x4, offset = 0x4, fixed_abs, tag = 'smem constant byte address 0x4 - core index']
  #allocation1 [shape = 'u32[144,128]{1,0:T(1,128)}', space=vmem, size = 0x12000, scoped, tag = 'internal scratch']
  #allocation2 [shape = 'f32[32,1]{1,0:T(8,128)}', space=vmem, size = 0x4000, scoped, tag = 'scratch operand']
  #allocation3 [shape = 'f32[32,1]{1,0:T(8,128)}', space=vmem, size = 0x4000, scoped, tag = 'scratch operand']
  #allocation4 [shape = 'f32[32,1]{1,0:T(8,128)}', space=vmem, size = 0x4000, scoped, tag = 'scratch operand']
  %s0 = inlined_call_operand.hbm [shape: f32[32,256], index: 0, kind: input, shape index: {}]
  %s1 = inlined_call_operand.hbm [shape: f32[32,256], index: 1, kind: input, shape index: {}]
  %s2 = inlined_call_operand.vmem [shape: f32[32,1], index: 2, kind: output, shape index: {}]
  %s3 = sld [smem:[#allocation0]]
  $region34: #{tpu_custom_call.1} parent=0
    _
  %s5 = ssub.s32 1, %s3
  %s6 = scalar_select 0, %s5, %s3
  $region1: #{tpu_custom_call.1} parent=0
    #allocation5 [shape = 'u8[32768]{0}', space=vmem, size = 0x8000, scoped, tag = 'input window, operand 0, single buffered']
    #allocation6 [shape = 's32[1]{0}', space=sflag, size = 0x4, scoped, tag = 'scoped memory for tpu_custom_call.1']
    #allocation7 [shape = 'u8[32768]{0}', space=vmem, size = 0x8000, scoped, tag = 'input window, operand 1, single buffered']
    #allocation8 [shape = 's32[1]{0}', space=sflag, size = 0x4, scoped, tag = 'scoped memory for tpu_custom_call.1']
    %7 = vsyncpa [#allocation6], 0
    %8 = vsyncpa [#allocation8], 0
    // Predicated region
    $region2: #{tpu_custom_call.1} parent=1 // pred_check
      _
    $region3: #{tpu_custom_call.1} parent=1 // pred_check_branch
      %10 = sbr.rel (0) target = $region5
    $region4: #{tpu_custom_call.1} parent=1 // pred_region
      %s12 = ssub.s32 1024, 1024
      %13 = vsyncadd [#allocation6], %s12
      %s14 = sshll.u32 [#allocation5], 4
      %s15 = int_to_ptr.vmem [resolvable:$true] %s14
      %20 = dma.hbm_to_vmem [thread:$0]  %s0, 1024, %s15, [#allocation6], 256, 256, 16
    $region5: #{tpu_custom_call.1} parent=1 // pred_fallthru
      _
    // Predicated region
    $region6: #{tpu_custom_call.1} parent=1 // pred_check
      _
    $region7: #{tpu_custom_call.1} parent=1 // pred_check_branch
      %22 = sbr.rel (0) target = $region9
    $region8: #{tpu_custom_call.1} parent=1 // pred_region
      %s24 = ssub.s32 1024, 1024
      %25 = vsyncadd [#allocation8], %s24
      %s26 = sshll.u32 [#allocation7], 4
      %s27 = int_to_ptr.vmem [resolvable:$true] %s26
      %32 = dma.hbm_to_vmem [thread:$0]  %s1, 1024, %s27, [#allocation8], 256, 256, 16
    $region9: #{tpu_custom_call.1} parent=1 // pred_fallthru
      _
    // Predicated region
    $region10: #{tpu_custom_call.1} parent=1 // pred_check
      _
    $region11: #{tpu_custom_call.1} parent=1 // pred_check_branch
      %34 = sbr.rel (0) target = $region13
    $region12: #{tpu_custom_call.1} parent=1 // pred_region
      %35 = dma.done [#allocation6], 1024
    $region13: #{tpu_custom_call.1} parent=1 // pred_fallthru
      _
    // Predicated region
    $region14: #{tpu_custom_call.1} parent=1 // pred_check
      _
    $region15: #{tpu_custom_call.1} parent=1 // pred_check_branch
      %37 = sbr.rel (0) target = $region17
    $region16: #{tpu_custom_call.1} parent=1 // pred_region
      %38 = dma.done [#allocation8], 1024
    $region17: #{tpu_custom_call.1} parent=1 // pred_fallthru
      _
    %p39 = scmp.eq.s32.totalorder 0, 0
    // Predicated region
    $region18: #{tpu_custom_call.1} parent=1 // pred_check
      %p40 = pneg %p39
    $region19: #{tpu_custom_call.1} parent=1 // pred_check_branch
      %42 = sbr.rel (%p40) target = $region21
    $region20: #{tpu_custom_call.1} parent=1 // pred_region
      %vm43 = vcmask 7168
      %44 = vst.msk [vmem:[#allocation2] sm:$0xff] %vm43, 0.0
      %45 = vst.msk [vmem:[#allocation2 + $0x8] sm:$0xff] %vm43, 0.0
      %46 = vst.msk [vmem:[#allocation2 + $0x10] sm:$0xff] %vm43, 0.0
      %47 = vst.msk [vmem:[#allocation2 + $0x18] sm:$0xff] %vm43, 0.0
      %48 = vst.msk [vmem:[#allocation3] sm:$0xff] %vm43, 0.0
      %49 = vst.msk [vmem:[#allocation3 + $0x8] sm:$0xff] %vm43, 0.0
      %50 = vst.msk [vmem:[#allocation3 + $0x10] sm:$0xff] %vm43, 0.0
      %51 = vst.msk [vmem:[#allocation3 + $0x18] sm:$0xff] %vm43, 0.0
      %52 = vst.msk [vmem:[#allocation4] sm:$0xff] %vm43, 0.0
      %53 = vst.msk [vmem:[#allocation4 + $0x8] sm:$0xff] %vm43, 0.0
      %54 = vst.msk [vmem:[#allocation4 + $0x10] sm:$0xff] %vm43, 0.0
      %55 = vst.msk [vmem:[#allocation4 + $0x18] sm:$0xff] %vm43, 0.0
    $region21: #{tpu_custom_call.1} parent=1 // pred_fallthru
      _
    %v56 = vld [vmem:[#allocation5] sm:$0xff]
    %v57 = vld [vmem:[#allocation5 + $0x8] sm:$0xff]
    %v58 = vld [vmem:[#allocation5 + $0x10] sm:$0xff]
    %v59 = vld [vmem:[#allocation5 + $0x18] sm:$0xff]
    %v60 = vld [vmem:[#allocation5 + $0x20] sm:$0xff]
    %v61 = vld [vmem:[#allocation5 + $0x28] sm:$0xff]
    %v62 = vld [vmem:[#allocation5 + $0x30] sm:$0xff]
    %v63 = vld [vmem:[#allocation5 + $0x38] sm:$0xff]
    %v64 = vld [vmem:[#allocation7] sm:$0xff]
    %v65 = vld [vmem:[#allocation7 + $0x8] sm:$0xff]
    %v66 = vld [vmem:[#allocation7 + $0x10] sm:$0xff]
    %v67 = vld [vmem:[#allocation7 + $0x18] sm:$0xff]
    %v68 = vld [vmem:[#allocation7 + $0x20] sm:$0xff]
    %v69 = vld [vmem:[#allocation7 + $0x28] sm:$0xff]
    %v70 = vld [vmem:[#allocation7 + $0x30] sm:$0xff]
    %v71 = vld [vmem:[#allocation7 + $0x38] sm:$0xff]
    %v72 = vld [vmem:[#allocation2] sm:$0xff]
    %v73 = vld [vmem:[#allocation2 + $0x8] sm:$0xff]
    %v74 = vld [vmem:[#allocation2 + $0x10] sm:$0xff]
    %v75 = vld [vmem:[#allocation2 + $0x18] sm:$0xff]
    %v76 = vmul.f32 %v56, %v64
    %v77 = vmul.f32 %v57, %v65
    %v78 = vmul.f32 %v58, %v66
    %v79 = vmul.f32 %v59, %v67
    %v80 = vmul.f32 %v60, %v68
    %v81 = vmul.f32 %v61, %v69
    %v82 = vmul.f32 %v62, %v70
    %v83 = vmul.f32 %v63, %v71
    %v84 = vadd.f32 %v76, %v77
    %85 = vadd.xlane.f32.xlu0 %v84
    %v86 = vpop.xlane.xlu0 %85
    %v87 = vadd.f32 %v78, %v79
    %88 = vadd.xlane.f32.xlu0 %v87
    %v89 = vpop.xlane.xlu0 %88
    %v90 = vadd.f32 %v80, %v81
    %91 = vadd.xlane.f32.xlu0 %v90
    %v92 = vpop.xlane.xlu0 %91
    %v93 = vadd.f32 %v82, %v83
    %94 = vadd.xlane.f32.xlu0 %v93
    %v95 = vpop.xlane.xlu0 %94
    %v96 = vadd.f32 %v72, %v86
    %v97 = vadd.f32 %v73, %v89
    %v98 = vadd.f32 %v74, %v92
    %v99 = vadd.f32 %v75, %v95
    %vm100 = vcmask 7168
    %101 = vst.msk [vmem:[#allocation2] sm:$0xff] %vm100, %v96
    %102 = vst.msk [vmem:[#allocation2 + $0x8] sm:$0xff] %vm100, %v97
    %103 = vst.msk [vmem:[#allocation2 + $0x10] sm:$0xff] %vm100, %v98
    %104 = vst.msk [vmem:[#allocation2 + $0x18] sm:$0xff] %vm100, %v99
    %v105 = vld [vmem:[#allocation3] sm:$0xff]
    %v106 = vld [vmem:[#allocation3 + $0x8] sm:$0xff]
    %v107 = vld [vmem:[#allocation3 + $0x10] sm:$0xff]
    %v108 = vld [vmem:[#allocation3 + $0x18] sm:$0xff]
    %v109 = vmul.f32 %v56, %v56
    %v110 = vmul.f32 %v57, %v57
    %v111 = vmul.f32 %v58, %v58
    %v112 = vmul.f32 %v59, %v59
    %v113 = vmul.f32 %v60, %v60
    %v114 = vmul.f32 %v61, %v61
    %v115 = vmul.f32 %v62, %v62
    %v116 = vmul.f32 %v63, %v63
    %v117 = vadd.f32 %v109, %v110
    %118 = vadd.xlane.f32.xlu0 %v117
    %v119 = vpop.xlane.xlu0 %118
    %v120 = vadd.f32 %v111, %v112
    %121 = vadd.xlane.f32.xlu0 %v120
    %v122 = vpop.xlane.xlu0 %121
    %v123 = vadd.f32 %v113, %v114
    %124 = vadd.xlane.f32.xlu0 %v123
    %v125 = vpop.xlane.xlu0 %124
    %v126 = vadd.f32 %v115, %v116
    %127 = vadd.xlane.f32.xlu0 %v126
    %v128 = vpop.xlane.xlu0 %127
    %v129 = vadd.f32 %v105, %v119
    %v130 = vadd.f32 %v106, %v122
    %v131 = vadd.f32 %v107, %v125
    %v132 = vadd.f32 %v108, %v128
    %133 = vst.msk [vmem:[#allocation3] sm:$0xff] %vm100, %v129
    %134 = vst.msk [vmem:[#allocation3 + $0x8] sm:$0xff] %vm100, %v130
    %135 = vst.msk [vmem:[#allocation3 + $0x10] sm:$0xff] %vm100, %v131
    %136 = vst.msk [vmem:[#allocation3 + $0x18] sm:$0xff] %vm100, %v132
    %v137 = vld [vmem:[#allocation4] sm:$0xff]
    %v138 = vld [vmem:[#allocation4 + $0x8] sm:$0xff]
    %v139 = vld [vmem:[#allocation4 + $0x10] sm:$0xff]
    %v140 = vld [vmem:[#allocation4 + $0x18] sm:$0xff]
    %v141 = vmul.f32 %v64, %v64
    %v142 = vmul.f32 %v65, %v65
    %v143 = vmul.f32 %v66, %v66
    %v144 = vmul.f32 %v67, %v67
    %v145 = vmul.f32 %v68, %v68
    %v146 = vmul.f32 %v69, %v69
    %v147 = vmul.f32 %v70, %v70
    %v148 = vmul.f32 %v71, %v71
    %v149 = vadd.f32 %v141, %v142
    %150 = vadd.xlane.f32.xlu0 %v149
    %v151 = vpop.xlane.xlu0 %150
    %v152 = vadd.f32 %v143, %v144
    %153 = vadd.xlane.f32.xlu0 %v152
    %v154 = vpop.xlane.xlu0 %153
    %v155 = vadd.f32 %v145, %v146
    %156 = vadd.xlane.f32.xlu0 %v155
    %v157 = vpop.xlane.xlu0 %156
    %v158 = vadd.f32 %v147, %v148
    %159 = vadd.xlane.f32.xlu0 %v158
    %v160 = vpop.xlane.xlu0 %159
    %v161 = vadd.f32 %v137, %v151
    %v162 = vadd.f32 %v138, %v154
    %v163 = vadd.f32 %v139, %v157
    %v164 = vadd.f32 %v140, %v160
    %165 = vst.msk [vmem:[#allocation4] sm:$0xff] %vm100, %v161
    %166 = vst.msk [vmem:[#allocation4 + $0x8] sm:$0xff] %vm100, %v162
    %167 = vst.msk [vmem:[#allocation4 + $0x10] sm:$0xff] %vm100, %v163
    %168 = vst.msk [vmem:[#allocation4 + $0x18] sm:$0xff] %vm100, %v164
    // Predicated region
    $region22: #{tpu_custom_call.1} parent=1 // pred_check
      %p169 = pneg %p39
    $region23: #{tpu_custom_call.1} parent=1 // pred_check_branch
      %171 = sbr.rel (%p169) target = $region25
    $region24: #{tpu_custom_call.1} parent=1 // pred_region
      %v172 = vld [vmem:[#allocation3] sm:$0xff]
      %v173 = vld [vmem:[#allocation3 + $0x8] sm:$0xff]
      %v174 = vld [vmem:[#allocation3 + $0x10] sm:$0xff]
      %v175 = vld [vmem:[#allocation3 + $0x18] sm:$0xff]
      %v176 = vld [vmem:[#allocation4] sm:$0xff]
      %v177 = vld [vmem:[#allocation4 + $0x8] sm:$0xff]
      %v178 = vld [vmem:[#allocation4 + $0x10] sm:$0xff]
      %v179 = vld [vmem:[#allocation4 + $0x18] sm:$0xff]
      %v180 = vmul.f32 %v172, %v176
      %v181 = vmul.f32 %v173, %v177
      %v182 = vmul.f32 %v174, %v178
      %v183 = vmul.f32 %v175, %v179
      %v184 = vmax.f32 %v180, 1e-16
      %v185 = vmax.f32 %v181, 1e-16
      %v186 = vmax.f32 %v182, 1e-16
      %v187 = vmax.f32 %v183, 1e-16
      %v188 = vld [vmem:[#allocation2] sm:$0xff]
      %v189 = vld [vmem:[#allocation2 + $0x8] sm:$0xff]
      %v190 = vld [vmem:[#allocation2 + $0x10] sm:$0xff]
      %v191 = vld [vmem:[#allocation2 + $0x18] sm:$0xff]
      %v192 = vrsqrt.pop %v184
      %v193 = vrsqrt.pop %v185
      %v194 = vrsqrt.pop %v186
      %v195 = vrsqrt.pop %v187
      %v196 = vmul.f32 %v188, %v192
      %v197 = vmul.f32 %v189, %v193
      %v198 = vmul.f32 %v190, %v194
      %v199 = vmul.f32 %v191, %v195
      %200 = vst.msk [vmem:[%s2] sm:$0xff] %vm100, %v196
      %201 = vst.msk [vmem:[%s2 + $0x8] sm:$0xff] %vm100, %v197
      %202 = vst.msk [vmem:[%s2 + $0x10] sm:$0xff] %vm100, %v198
      %203 = vst.msk [vmem:[%s2 + $0x18] sm:$0xff] %vm100, %v199
    $region25: #{tpu_custom_call.1} parent=1 // pred_fallthru
      _
    // Predicated region
    $region26: #{tpu_custom_call.1} parent=1 // pred_check
      _
    $region27: #{tpu_custom_call.1} parent=1 // pred_check_branch
      %205 = sbr.rel (0) target = $region29
    $region28: #{tpu_custom_call.1} parent=1 // pred_region
      _
    $region29: #{tpu_custom_call.1} parent=1 // pred_fallthru
      _
    // Predicated region
    $region30: #{tpu_custom_call.1} parent=1 // pred_check
      _
    $region31: #{tpu_custom_call.1} parent=1 // pred_check_branch
      %207 = sbr.rel (0) target = $region33
    $region32: #{tpu_custom_call.1} parent=1 // pred_region
      _
    $region33: #{tpu_custom_call.1} parent=1 // pred_fallthru
      _
    %208 = vsyncpa [#allocation6], 1
    %209 = vsyncpa [#allocation8], 1

</llo_original>
